<compile_context>
chip_gen: v5e
topology: v5e:2x2
jax: 0.10.0
libtpu: 0.0.40
codegen_flags: <defaults>
</compile_context>

<pallas_src>
import functools

import jax
import jax.numpy as jnp
from jax.experimental import pallas as pl
from jax.experimental.pallas import tpu as pltpu

_LANE = 128
_SUBLANE = 8


def _query_vmem_bytes():
    """Best-effort trace-time VMEM capacity query; conservative fallback."""
    try:
        info = pltpu.get_tpu_info()
        for attr in ("vmem_capacity_bytes", "vmem_bytes", "vmem_size_bytes"):
            v = getattr(info, attr, None)
            if v:
                return int(v)
    except Exception:
        pass
    return 64 * 1024 * 1024  # v7x-like fallback -> smaller, always-safe tiles


_VMEM_BYTES = _query_vmem_bytes()
_BIG_VMEM = _VMEM_BYTES >= 100 * 1024 * 1024  # v5e / v6e (128 MiB physical)


def _sigmoid_kernel(x_ref, o_ref):
    # Load tile, widen once to f32 (EUP exp path, also correct on v5e),
    # cast once on the store.
    x = x_ref[...].astype(jnp.float32)
    o_ref[...] = jax.nn.sigmoid(x).astype(o_ref.dtype)


def _choose_width(total, cap=2048):
    """Lane-dense slab width (multiple of 128).  Returns (W, needs_pad)."""
    if total >= _LANE and total % _LANE == 0:
        for k in range(cap // _LANE, 0, -1):
            w = k * _LANE
            if total % w == 0:
                return w, False  # free reshape, no copy
    # Non-128-divisible total: pad the flat tail to a multiple of 512.
    return 512, True


def _choose_row_tile(M, W, itemsize):
    """Row tile: multiple of 8, sized for VMEM, >=2 grid blocks when possible."""
    if M <= _SUBLANE:
        return M  # full-extent block on a tiny slab (always legal)
    per_block_bytes = (4 if _BIG_VMEM else 2) * 1024 * 1024
    tm = per_block_bytes // (W * itemsize)
    tm = min(tm, 1024 if _BIG_VMEM else 512)
    # Keep at least 2 row blocks so ("parallel",) shards across v7x's 2 TCs.
    tm = min(tm, -(-M // 2))
    tm = max(_SUBLANE, ((tm + _SUBLANE - 1) // _SUBLANE) * _SUBLANE)
    return tm


@functools.partial(jax.jit, static_argnames=("task_type",))
def prediction_layer(x, task_type="classification"):
    if task_type not in ("classification", "regression"):
        raise ValueError("task_type must be classification or regression")
    if task_type == "regression":
        # Identity — faithful to the PyTorch module; no kernel needed.
        return x

    orig_shape = x.shape
    out_dtype = x.dtype if jnp.issubdtype(x.dtype, jnp.floating) else jnp.float32
    total = x.size
    if total == 0:
        return x.astype(out_dtype)

    flat = x.reshape(-1)
    W, needs_pad = _choose_width(total)
    if needs_pad:
        padded_total = pl.cdiv(total, W) * W
        flat = jnp.pad(flat, (0, padded_total - total))
    else:
        padded_total = total
    M = padded_total // W
    x2d = flat.reshape(M, W)

    itemsize = max(x.dtype.itemsize, jnp.dtype(out_dtype).itemsize)
    tm = _choose_row_tile(M, W, itemsize)
    grid = (pl.cdiv(M, tm),)  # cdiv grid; Pallas masks the partial edge block

    out = pl.pallas_call(
        _sigmoid_kernel,
        out_shape=jax.ShapeDtypeStruct((M, W), out_dtype),
        grid_spec=pltpu.PrefetchScalarGridSpec(
            num_scalar_prefetch=0,
            grid=grid,
            in_specs=[pl.BlockSpec((tm, W), lambda i: (i, 0))],
            out_specs=pl.BlockSpec((tm, W), lambda i: (i, 0)),
        ),
        compiler_params=pltpu.CompilerParams(
            dimension_semantics=("parallel",),
            vmem_limit_bytes=(64 if _BIG_VMEM else 32) * 1024 * 1024,
        ),
    )(x2d)

    out_flat = out.reshape(-1)
    if needs_pad:
        out_flat = out_flat[:total]
    return out_flat.reshape(orig_shape)


if __name__ == "__main__":
    key = jax.random.PRNGKey(0)
    k0, k1, k2 = jax.random.split(key, 3)

    def _check(x):
        y = jax.block_until_ready(prediction_layer(x, task_type="classification"))
        ref = jax.nn.sigmoid(x.astype(jnp.float32)).astype(y.dtype)
        assert y.shape == x.shape, (y.shape, x.shape)
        assert jnp.allclose(y, ref, atol=1e-6, rtol=1e-6), "classification mismatch"

    # Small logits tensor consistent with the module: batch=2, seq=8, hidden=32.
    x = jax.random.normal(k0, (2, 8, 32), dtype=jnp.float32)
    _check(x)

    # Typical PredictionLayer output shape: (batch, 1) with a non-128 batch.
    _check(jax.random.normal(k1, (257, 1), dtype=jnp.float32))

    # Non-divisible total exercising the pad path, partial edge block and the
    # >=2-block (megacore) row grid.
    _check(jax.random.normal(k2, (1000, 33), dtype=jnp.float32))

    # regression path: identity
    y_reg = jax.block_until_ready(prediction_layer(x, task_type="regression"))
    assert jnp.allclose(y_reg, x), "regression mismatch"

    print("KERNEL_OK")
</pallas_src>

<mosaic_0001>
module attributes {stable_mosaic.version = 11 : i64} {
  func.func @_sigmoid_kernel(%arg0: i32, %arg1: memref<1x512xf32, #tpu.memory_space<vmem>>, %arg2: memref<1x512xf32, #tpu.memory_space<vmem>>) attributes {dimension_semantics = [#tpu.dimension_semantics<parallel>], iteration_bounds = array<i64: 1>, scalar_prefetch = 0 : i64, scratch_operands = 0 : i64, tpu.core_type = #tpu.core_type<tc>, window_params = [{transform_indices = @transform_0, window_bounds = array<i64: 1, 512>}, {transform_indices = @transform_1, window_bounds = array<i64: 1, 512>}]} {
    %c0 = arith.constant 0 : index
    %c0_0 = arith.constant 0 : index
    %0 = vector.load %arg1[%c0, %c0_0] : memref<1x512xf32, #tpu.memory_space<vmem>>, vector<1x512xf32>
    %1 = arith.negf %0 : vector<1x512xf32>
    %2 = math.exp %1 : vector<1x512xf32>
    %cst = arith.constant 1.000000e+00 : f32
    %3 = vector.broadcast %cst : f32 to vector<1x512xf32>
    %4 = arith.addf %3, %2 : vector<1x512xf32>
    %5 = arith.divf %3, %4 : vector<1x512xf32>
    %c0_1 = arith.constant 0 : index
    %c0_2 = arith.constant 0 : index
    %6 = vector.load %arg2[%c0_1, %c0_2] : memref<1x512xf32, #tpu.memory_space<vmem>>, vector<1x512xf32>
    tpu.vector_store %arg2[%c0_1, %c0_2], %5 {strides = array<i32>} : memref<1x512xf32, #tpu.memory_space<vmem>>, vector<1x512xf32>,
    return
  }
  func.func @transform_0(%arg0: i32) -> (i32, i32) {
    %c0_i32 = arith.constant 0 : i32
    %c0_i32_0 = arith.constant 0 : i32
    return %arg0, %c0_i32 : i32, i32
  }
  func.func @transform_1(%arg0: i32) -> (i32, i32) {
    %c0_i32 = arith.constant 0 : i32
    %c0_i32_0 = arith.constant 0 : i32
    return %arg0, %c0_i32 : i32, i32
  }
}

</mosaic_0001>

<llo_original>
// kernel: prediction_layer.1
$region0: #{prediction_layer.1}
  #allocation0 [shape = 'u32[]', space=smem, size = 0x4, offset = 0x4, fixed_abs, tag = 'smem constant byte address 0x4 - core index']
  #allocation1 [shape = 'u32[72,128]{1,0:T(1,128)}', space=vmem, size = 0x9000, scoped, tag = 'internal scratch']
  %s0 = inlined_call_operand.vmem [shape: f32[1,512], index: 0, kind: input, shape index: {}]
  %s1 = inlined_call_operand.vmem [shape: f32[1,512], index: 1, kind: output, shape index: {}]
  %s2 = sld [smem:[#allocation0]]
  $region14: #{prediction_layer.1} parent=0
    _
  %s4 = ssub.s32 1, %s2
  %s5 = scalar_select 0, %s4, %s2
  // Predicated region
  $region2: #{prediction_layer.1} parent=0 // pred_check
    _
  $region3: #{prediction_layer.1} parent=0 // pred_check_branch
    %7 = sbr.rel (0) target = $region5
  $region4: #{prediction_layer.1} parent=0 // pred_region
    _
  $region5: #{prediction_layer.1} parent=0 // pred_fallthru
    _
  %v8 = vld [vmem:[%s0] sm:$0xf]
  %v9 = vxor.u32 %v8, 2147483648
  %v10 = vmul.f32 %v9, 1.442695
  %v11 = vpow.pop %v10
  %v12 = vadd.f32 %v11, 1.0
  %v13 = vrcp.pop %v12
  %v14 = vmul.f32 %v12, %v13
  %v15 = vsub.f32 1.0, %v14
  %v16 = vmul.f32 %v13, %v15
  %v17 = vadd.f32 %v13, %v16
  %vm18 = vweird.f32 %v12
  %vm19 = vweird.f32 %v13
  %vm20 = vmor %vm18, %vm19
  %v21 = vsel %vm20, %v13, %v17
  %v22 = vand.u32 2147483647, %v12
  %vm23 = vcmp.eq.f32.partialorder %v22, 8.507059e+37
  %v24 = vand.u32 %v12, 2147483648
  %v25 = vor.u32 1.1754944e-38, %v24
  %v26 = vsel %vm23, %v25, %v21
  %v27 = vmul.f32 1.0, %v26
  %v28 = vlaneseq
  %vm29 = vcmp.ge.s32.totalorder %v28, 0
  %vm30 = vcmp.lt.s32.totalorder %v28, 512
  %vm31 = vmand %vm29, %vm30
  %32 = vst.msk [vmem:[%s1] sm:$0xf] %vm31, %v27
  // Predicated region
  $region6: #{prediction_layer.1} parent=0 // pred_check
    _
  $region7: #{prediction_layer.1} parent=0 // pred_check_branch
    %34 = sbr.rel (0) target = $region9
  $region8: #{prediction_layer.1} parent=0 // pred_region
    _
  $region9: #{prediction_layer.1} parent=0 // pred_fallthru
    _
  // Predicated region
  $region10: #{prediction_layer.1} parent=0 // pred_check
    _
  $region11: #{prediction_layer.1} parent=0 // pred_check_branch
    %36 = sbr.rel (0) target = $region13
  $region12: #{prediction_layer.1} parent=0 // pred_region
    _
  $region13: #{prediction_layer.1} parent=0 // pred_fallthru
    _

</llo_original>
